<compile_context>
chip_gen: v5e
topology: v5e:2x2
jax: 0.10.0
libtpu: 0.0.40
codegen_flags: <defaults>
</compile_context>

<pallas_src>
import math
import functools

import jax
import jax.numpy as jnp
from jax import lax
from jax.experimental import pallas as pl
from jax.experimental.pallas import tpu as pltpu


def _mha_kernel(q_ref, k_ref, v_ref,
                wq_ref, bq_ref, wk_ref, bk_ref, wv_ref, bv_ref,
                wo_ref, bo_ref,
                o_ref, *, h, batch_tile):
    """One batch tile (TB batch elements) per grid step.

    q_ref/k_ref/v_ref : (TB, S, D)   bf16 activation tiles
    wq/wk/wv_ref      : (D, D)       pre-transposed (in, out) bf16 weights
                                     (1/sqrt(d_k) folded into wq)
    bq/bk/bv_ref      : (1, D)       f32 biases (1/sqrt(d_k) folded into bq)
    wo_ref            : (h, d_k, D)  head-stacked rows of Wo^T, bf16
    bo_ref            : (1, D)       f32 bias
    o_ref             : (TB, S, D)   output tile
    """
    S, D = q_ref.shape[1], q_ref.shape[2]
    d_k = D // h
    f32 = jnp.float32
    cdt = q_ref.dtype                       # MXU compute dtype (bf16)

    # Constant operands, loaded once per grid step (hoisted out of the loop).
    wq = wq_ref[...]
    wk = wk_ref[...]
    wv = wv_ref[...]
    wo = wo_ref[...]
    bq = bq_ref[...]
    bk = bk_ref[...]
    bv = bv_ref[...]
    bo = bo_ref[...]

    def one_batch(tb, carry):
        # Full-width lane-dense input projections: (S,D)@(D,D), f32 accumulate.
        q_p = (jnp.dot(q_ref[tb], wq, preferred_element_type=f32) + bq).astype(cdt)
        k_p = (jnp.dot(k_ref[tb], wk, preferred_element_type=f32) + bk).astype(cdt)
        v_p = (jnp.dot(v_ref[tb], wv, preferred_element_type=f32) + bv).astype(cdt)

        # Per-head attention; output projection accumulated into a single
        # (S, D) f32 buffer -- algebraically concat_h(ctx_h) @ Wo^T.
        acc = None
        for hi in range(h):                       # static, unrolled at trace
            lo = hi * d_k
            q_h = q_p[:, lo:lo + d_k]              # (S, d_k) static slices
            k_h = k_p[:, lo:lo + d_k]
            v_h = v_p[:, lo:lo + d_k]

            # scores_h = q_h @ k_h^T (contract over d_k), f32.
            s = lax.dot_general(q_h, k_h, (((1,), (1,)), ((), ())),
                                preferred_element_type=f32)      # (S, S)
            m = jnp.max(s, axis=-1, keepdims=True)
            p = jnp.exp(s - m)
            p = p * pl.reciprocal(jnp.sum(p, axis=-1, keepdims=True),
                                  approx=True)

            ctx = jnp.dot(p.astype(cdt), v_h,
                          preferred_element_type=f32)            # (S, d_k)
            contrib = jnp.dot(ctx.astype(cdt), wo[hi],
                              preferred_element_type=f32)        # (S, D)
            acc = contrib if acc is None else acc + contrib

        o_ref[tb] = (acc + bo).astype(o_ref.dtype)
        return carry

    if batch_tile == 1:
        one_batch(0, 0)
    else:
        # fori_loop (not an unrolled Python loop) bounds the live working set
        # to a single batch element.
        lax.fori_loop(0, batch_tile, one_batch, 0)


def _vmem_limit_bytes():
    """Generation-aware VMEM budget (leave headroom for Mosaic scratch)."""
    try:
        cap = int(pltpu.get_tpu_info().vmem_capacity_bytes)
    except Exception:
        cap = 128 * 1024 * 1024
    # ~48 MiB on v7x (64 MiB physical), 96 MiB on v5e/v6e (128 MiB physical).
    return int(min(cap - cap // 4, 96 * 1024 * 1024))


def multi_headed_attention(query, key, value, params, *, h,
                           compute_dtype=jnp.bfloat16, batch_tile=None):
    """params: dict wq,bq,wk,bk,wv,bv,wo,bo with weights in PyTorch (out, in) form."""
    B, S, D = query.shape
    assert D % h == 0
    d_k = D // h
    out_dtype = query.dtype
    scale = 1.0 / math.sqrt(d_k)
    f32 = jnp.float32

    if batch_tile is None:
        candidates = [tb for tb in (8, 4, 2, 1) if B % tb == 0]
        # Prefer >= 2 grid steps so the "parallel" axis can shard across the
        # two TensorCores of a v7x chip (no effect on v5e/v6e).
        preferred = [tb for tb in candidates if B // tb >= 2]
        batch_tile = (preferred or candidates)[0]
    assert B % batch_tile == 0
    TB = batch_tile

    # One-time weight re-layout in the wrapper (keeps relayout out of the
    # kernel): input-projection weights pre-transposed to (in, out) bf16 with
    # 1/sqrt(d_k) folded into Wq/bq; output-projection weight as head-stacked
    # rows of Wo^T.
    wq_t = jnp.asarray(params["wq"].T * scale, dtype=compute_dtype)      # (D, D)
    wk_t = jnp.asarray(params["wk"].T, dtype=compute_dtype)              # (D, D)
    wv_t = jnp.asarray(params["wv"].T, dtype=compute_dtype)              # (D, D)
    bq = jnp.asarray(params["bq"] * scale, dtype=f32).reshape(1, D)
    bk = jnp.asarray(params["bk"], dtype=f32).reshape(1, D)
    bv = jnp.asarray(params["bv"], dtype=f32).reshape(1, D)
    wo_h = jnp.asarray(params["wo"].T.reshape(h, d_k, D), dtype=compute_dtype)
    bo = jnp.asarray(params["bo"], dtype=f32).reshape(1, D)

    # bf16 activations into the kernel: halves the dominant HBM->VMEM traffic.
    q_in = query.astype(compute_dtype)
    k_in = key.astype(compute_dtype)
    v_in = value.astype(compute_dtype)

    qkv_spec = pl.BlockSpec((TB, S, D), lambda b: (b, 0, 0))
    w_in_spec = pl.BlockSpec((D, D), lambda b: (0, 0))
    bias_spec = pl.BlockSpec((1, D), lambda b: (0, 0))
    w_out_spec = pl.BlockSpec((h, d_k, D), lambda b: (0, 0, 0))

    grid_spec = pltpu.PrefetchScalarGridSpec(
        num_scalar_prefetch=0,
        grid=(B // TB,),
        in_specs=[qkv_spec, qkv_spec, qkv_spec,
                  w_in_spec, bias_spec,
                  w_in_spec, bias_spec,
                  w_in_spec, bias_spec,
                  w_out_spec, bias_spec],
        out_specs=pl.BlockSpec((TB, S, D), lambda b: (b, 0, 0)),
    )

    kernel = functools.partial(_mha_kernel, h=h, batch_tile=TB)

    return pl.pallas_call(
        kernel,
        out_shape=jax.ShapeDtypeStruct((B, S, D), out_dtype),
        grid_spec=grid_spec,
        compiler_params=pltpu.CompilerParams(
            dimension_semantics=("parallel",),
            vmem_limit_bytes=_vmem_limit_bytes()),
    )(q_in, k_in, v_in,
      wq_t, bq, wk_t, bk, wv_t, bv, wo_h, bo)


def _reference(query, key, value, params, *, h):
    """Pure-JAX f32 reference mirroring the PyTorch forward exactly."""
    B, S, D = query.shape
    d_k = D // h

    def lin(x, w, b):   # PyTorch Linear: x @ W^T + b, W is (out, in)
        return x @ w.T + b

    def split_heads(x):  # (B,S,D) -> (B,h,S,d_k)
        return x.reshape(B, S, h, d_k).transpose(0, 2, 1, 3)

    Q = split_heads(lin(query, params["wq"], params["bq"]))
    K = split_heads(lin(key, params["wk"], params["bk"]))
    V = split_heads(lin(value, params["wv"], params["bv"]))

    scores = jnp.einsum("bhqd,bhkd->bhqk", Q, K) / math.sqrt(d_k)
    p = jax.nn.softmax(scores, axis=-1)
    x = jnp.einsum("bhqk,bhkd->bhqd", p, V)
    x = x.transpose(0, 2, 1, 3).reshape(B, S, D)
    return lin(x, params["wo"], params["bo"])


if __name__ == "__main__":
    # Small shapes consistent with the module: batch=2, seq=8, d_model=32, h=4
    B, S, D, H = 2, 8, 32, 4

    key0 = jax.random.PRNGKey(0)
    keys = jax.random.split(key0, 12)

    def winit(k):
        return (0.02 * jax.random.normal(k, (D, D))).astype(jnp.float32)

    def binit(k):
        return (0.01 * jax.random.normal(k, (D,))).astype(jnp.float32)

    params = {
        "wq": winit(keys[0]), "bq": binit(keys[1]),
        "wk": winit(keys[2]), "bk": binit(keys[3]),
        "wv": winit(keys[4]), "bv": binit(keys[5]),
        "wo": winit(keys[6]), "bo": binit(keys[7]),
    }

    query = jax.random.normal(keys[8], (B, S, D), dtype=jnp.float32)
    key_ = jax.random.normal(keys[9], (B, S, D), dtype=jnp.float32)
    value = jax.random.normal(keys[10], (B, S, D), dtype=jnp.float32)

    out = multi_headed_attention(query, key_, value, params, h=H)
    out = jax.block_until_ready(out)

    ref = _reference(query, key_, value, params, h=H)
    assert out.shape == (B, S, D)
    # bf16 MXU inputs + approx reciprocal -> validate at a bf16-appropriate tolerance.
    assert jnp.allclose(out, ref, atol=1e-2, rtol=1e-2), (
        f"max abs err {jnp.max(jnp.abs(out - ref))}")

    print("KERNEL_OK")
</pallas_src>

<mosaic_0001>
module attributes {stable_mosaic.version = 11 : i64} {
  func.func @_mha_kernel(%arg0: i32, %arg1: memref<1x8x32xbf16, #tpu.memory_space<vmem>>, %arg2: memref<1x8x32xbf16, #tpu.memory_space<vmem>>, %arg3: memref<1x8x32xbf16, #tpu.memory_space<vmem>>, %arg4: memref<32x32xbf16, #tpu.memory_space<vmem>>, %arg5: memref<1x32xf32, #tpu.memory_space<vmem>>, %arg6: memref<32x32xbf16, #tpu.memory_space<vmem>>, %arg7: memref<1x32xf32, #tpu.memory_space<vmem>>, %arg8: memref<32x32xbf16, #tpu.memory_space<vmem>>, %arg9: memref<1x32xf32, #tpu.memory_space<vmem>>, %arg10: memref<4x8x32xbf16, #tpu.memory_space<vmem>>, %arg11: memref<1x32xf32, #tpu.memory_space<vmem>>, %arg12: memref<1x8x32xf32, #tpu.memory_space<vmem>>) attributes {dimension_semantics = [#tpu.dimension_semantics<parallel>], iteration_bounds = array<i64: 2>, scalar_prefetch = 0 : i64, scratch_operands = 0 : i64, tpu.core_type = #tpu.core_type<tc>, window_params = [{transform_indices = @transform_0, window_bounds = array<i64: 1, 8, 32>}, {transform_indices = @transform_1, window_bounds = array<i64: 1, 8, 32>}, {transform_indices = @transform_2, window_bounds = array<i64: 1, 8, 32>}, {pipeline_mode = #tpu.pipeline_mode<synchronous>, transform_indices = @transform_3, window_bounds = array<i64: 32, 32>}, {pipeline_mode = #tpu.pipeline_mode<synchronous>, transform_indices = @transform_4, window_bounds = array<i64: 1, 32>}, {pipeline_mode = #tpu.pipeline_mode<synchronous>, transform_indices = @transform_5, window_bounds = array<i64: 32, 32>}, {pipeline_mode = #tpu.pipeline_mode<synchronous>, transform_indices = @transform_6, window_bounds = array<i64: 1, 32>}, {pipeline_mode = #tpu.pipeline_mode<synchronous>, transform_indices = @transform_7, window_bounds = array<i64: 32, 32>}, {pipeline_mode = #tpu.pipeline_mode<synchronous>, transform_indices = @transform_8, window_bounds = array<i64: 1, 32>}, {pipeline_mode = #tpu.pipeline_mode<synchronous>, transform_indices = @transform_9, window_bounds = array<i64: 4, 8, 32>}, {pipeline_mode = #tpu.pipeline_mode<synchronous>, transform_indices = @transform_10, window_bounds = array<i64: 1, 32>}, {transform_indices = @transform_11, window_bounds = array<i64: 1, 8, 32>}]} {
    %c0 = arith.constant 0 : index
    %c0_0 = arith.constant 0 : index
    %0 = vector.load %arg4[%c0, %c0_0] : memref<32x32xbf16, #tpu.memory_space<vmem>>, vector<32x32xbf16>
    %c0_1 = arith.constant 0 : index
    %c0_2 = arith.constant 0 : index
    %1 = vector.load %arg6[%c0_1, %c0_2] : memref<32x32xbf16, #tpu.memory_space<vmem>>, vector<32x32xbf16>
    %c0_3 = arith.constant 0 : index
    %c0_4 = arith.constant 0 : index
    %2 = vector.load %arg8[%c0_3, %c0_4] : memref<32x32xbf16, #tpu.memory_space<vmem>>, vector<32x32xbf16>
    %c0_5 = arith.constant 0 : index
    %c0_6 = arith.constant 0 : index
    %c0_7 = arith.constant 0 : index
    %3 = vector.load %arg10[%c0_5, %c0_6, %c0_7] : memref<4x8x32xbf16, #tpu.memory_space<vmem>>, vector<4x8x32xbf16>
    %c0_8 = arith.constant 0 : index
    %c0_9 = arith.constant 0 : index
    %4 = vector.load %arg5[%c0_8, %c0_9] : memref<1x32xf32, #tpu.memory_space<vmem>>, vector<1x32xf32>
    %c0_10 = arith.constant 0 : index
    %c0_11 = arith.constant 0 : index
    %5 = vector.load %arg7[%c0_10, %c0_11] : memref<1x32xf32, #tpu.memory_space<vmem>>, vector<1x32xf32>
    %c0_12 = arith.constant 0 : index
    %c0_13 = arith.constant 0 : index
    %6 = vector.load %arg9[%c0_12, %c0_13] : memref<1x32xf32, #tpu.memory_space<vmem>>, vector<1x32xf32>
    %c0_14 = arith.constant 0 : index
    %c0_15 = arith.constant 0 : index
    %7 = vector.load %arg11[%c0_14, %c0_15] : memref<1x32xf32, #tpu.memory_space<vmem>>, vector<1x32xf32>
    %c0_16 = arith.constant 0 : index
    %c0_17 = arith.constant 0 : index
    %c0_18 = arith.constant 0 : index
    %8 = vector.load %arg1[%c0_16, %c0_17, %c0_18] : memref<1x8x32xbf16, #tpu.memory_space<vmem>>, vector<1x8x32xbf16>
    %9 = vector.shape_cast %8 : vector<1x8x32xbf16> to vector<8x32xbf16>
    %cst = arith.constant dense<0.000000e+00> : vector<8x32xf32>
    %10 = tpu.matmul %9, %0, %cst {dimension_numbers = #tpu.dot_dimension_numbers<[1], [0], [0], [1], [0, 0, 1, 1], [], []>} : vector<8x32xbf16>, vector<32x32xbf16>, vector<8x32xf32> -> vector<8x32xf32>
    %11 = vector.broadcast %4 : vector<1x32xf32> to vector<8x32xf32>
    %12 = arith.addf %10, %11 : vector<8x32xf32>
    %13 = arith.truncf %12 : vector<8x32xf32> to vector<8x32xbf16>
    %c0_19 = arith.constant 0 : index
    %c0_20 = arith.constant 0 : index
    %c0_21 = arith.constant 0 : index
    %14 = vector.load %arg2[%c0_19, %c0_20, %c0_21] : memref<1x8x32xbf16, #tpu.memory_space<vmem>>, vector<1x8x32xbf16>
    %15 = vector.shape_cast %14 : vector<1x8x32xbf16> to vector<8x32xbf16>
    %cst_22 = arith.constant dense<0.000000e+00> : vector<8x32xf32>
    %16 = tpu.matmul %15, %1, %cst_22 {dimension_numbers = #tpu.dot_dimension_numbers<[1], [0], [0], [1], [0, 0, 1, 1], [], []>} : vector<8x32xbf16>, vector<32x32xbf16>, vector<8x32xf32> -> vector<8x32xf32>
    %17 = vector.broadcast %5 : vector<1x32xf32> to vector<8x32xf32>
    %18 = arith.addf %16, %17 : vector<8x32xf32>
    %19 = arith.truncf %18 : vector<8x32xf32> to vector<8x32xbf16>
    %c0_23 = arith.constant 0 : index
    %c0_24 = arith.constant 0 : index
    %c0_25 = arith.constant 0 : index
    %20 = vector.load %arg3[%c0_23, %c0_24, %c0_25] : memref<1x8x32xbf16, #tpu.memory_space<vmem>>, vector<1x8x32xbf16>
    %21 = vector.shape_cast %20 : vector<1x8x32xbf16> to vector<8x32xbf16>
    %cst_26 = arith.constant dense<0.000000e+00> : vector<8x32xf32>
    %22 = tpu.matmul %21, %2, %cst_26 {dimension_numbers = #tpu.dot_dimension_numbers<[1], [0], [0], [1], [0, 0, 1, 1], [], []>} : vector<8x32xbf16>, vector<32x32xbf16>, vector<8x32xf32> -> vector<8x32xf32>
    %23 = vector.broadcast %6 : vector<1x32xf32> to vector<8x32xf32>
    %24 = arith.addf %22, %23 : vector<8x32xf32>
    %25 = arith.truncf %24 : vector<8x32xf32> to vector<8x32xbf16>
    %26 = vector.extract_strided_slice %13 {offsets = [0, 0], sizes = [8, 8], strides = [1, 1]} : vector<8x32xbf16> to vector<8x8xbf16>
    %27 = vector.extract_strided_slice %19 {offsets = [0, 0], sizes = [8, 8], strides = [1, 1]} : vector<8x32xbf16> to vector<8x8xbf16>
    %28 = vector.extract_strided_slice %25 {offsets = [0, 0], sizes = [8, 8], strides = [1, 1]} : vector<8x32xbf16> to vector<8x8xbf16>
    %cst_27 = arith.constant dense<0.000000e+00> : vector<8x8xf32>
    %29 = tpu.matmul %26, %27, %cst_27 {dimension_numbers = #tpu.dot_dimension_numbers<[1], [1], [0], [0], [0, 0, 1, 0], [], []>} : vector<8x8xbf16>, vector<8x8xbf16>, vector<8x8xf32> -> vector<8x8xf32>
    %cst_28 = arith.constant dense<0xFF800000> : vector<8xf32>
    %30 = vector.multi_reduction <maximumf>, %29, %cst_28 [1] : vector<8x8xf32> to vector<8xf32>
    %31 = vector.shape_cast %30 : vector<8xf32> to vector<8x1xf32>
    %32 = vector.broadcast %31 : vector<8x1xf32> to vector<8x8xf32>
    %33 = arith.subf %29, %32 : vector<8x8xf32>
    %34 = math.exp %33 : vector<8x8xf32>
    %cst_29 = arith.constant dense<0.000000e+00> : vector<8xf32>
    %35 = vector.multi_reduction <add>, %34, %cst_29 [1] : vector<8x8xf32> to vector<8xf32>
    %36 = vector.shape_cast %35 : vector<8xf32> to vector<8x1xf32>
    %37 = tpu.reciprocal %36 {approx = true} : vector<8x1xf32> -> vector<8x1xf32>
    %38 = vector.broadcast %37 : vector<8x1xf32> to vector<8x8xf32>
    %39 = arith.mulf %34, %38 : vector<8x8xf32>
    %40 = arith.truncf %39 : vector<8x8xf32> to vector<8x8xbf16>
    %cst_30 = arith.constant dense<0.000000e+00> : vector<8x8xf32>
    %41 = tpu.matmul %40, %28, %cst_30 {dimension_numbers = #tpu.dot_dimension_numbers<[1], [0], [0], [1], [0, 0, 1, 1], [], []>} : vector<8x8xbf16>, vector<8x8xbf16>, vector<8x8xf32> -> vector<8x8xf32>
    %42 = arith.truncf %41 : vector<8x8xf32> to vector<8x8xbf16>
    %43 = vector.extract_strided_slice %3 {offsets = [0, 0, 0], sizes = [1, 8, 32], strides = [1, 1, 1]} : vector<4x8x32xbf16> to vector<1x8x32xbf16>
    %44 = vector.shape_cast %43 : vector<1x8x32xbf16> to vector<8x32xbf16>
    %cst_31 = arith.constant dense<0.000000e+00> : vector<8x32xf32>
    %45 = tpu.matmul %42, %44, %cst_31 {dimension_numbers = #tpu.dot_dimension_numbers<[1], [0], [0], [1], [0, 0, 1, 1], [], []>} : vector<8x8xbf16>, vector<8x32xbf16>, vector<8x32xf32> -> vector<8x32xf32>
    %46 = vector.extract_strided_slice %13 {offsets = [0, 8], sizes = [8, 8], strides = [1, 1]} : vector<8x32xbf16> to vector<8x8xbf16>
    %47 = vector.extract_strided_slice %19 {offsets = [0, 8], sizes = [8, 8], strides = [1, 1]} : vector<8x32xbf16> to vector<8x8xbf16>
    %48 = vector.extract_strided_slice %25 {offsets = [0, 8], sizes = [8, 8], strides = [1, 1]} : vector<8x32xbf16> to vector<8x8xbf16>
    %cst_32 = arith.constant dense<0.000000e+00> : vector<8x8xf32>
    %49 = tpu.matmul %46, %47, %cst_32 {dimension_numbers = #tpu.dot_dimension_numbers<[1], [1], [0], [0], [0, 0, 1, 0], [], []>} : vector<8x8xbf16>, vector<8x8xbf16>, vector<8x8xf32> -> vector<8x8xf32>
    %cst_33 = arith.constant dense<0xFF800000> : vector<8xf32>
    %50 = vector.multi_reduction <maximumf>, %49, %cst_33 [1] : vector<8x8xf32> to vector<8xf32>
    %51 = vector.shape_cast %50 : vector<8xf32> to vector<8x1xf32>
    %52 = vector.broadcast %51 : vector<8x1xf32> to vector<8x8xf32>
    %53 = arith.subf %49, %52 : vector<8x8xf32>
    %54 = math.exp %53 : vector<8x8xf32>
    %cst_34 = arith.constant dense<0.000000e+00> : vector<8xf32>
    %55 = vector.multi_reduction <add>, %54, %cst_34 [1] : vector<8x8xf32> to vector<8xf32>
    %56 = vector.shape_cast %55 : vector<8xf32> to vector<8x1xf32>
    %57 = tpu.reciprocal %56 {approx = true} : vector<8x1xf32> -> vector<8x1xf32>
    %58 = vector.broadcast %57 : vector<8x1xf32> to vector<8x8xf32>
    %59 = arith.mulf %54, %58 : vector<8x8xf32>
    %60 = arith.truncf %59 : vector<8x8xf32> to vector<8x8xbf16>
    %cst_35 = arith.constant dense<0.000000e+00> : vector<8x8xf32>
    %61 = tpu.matmul %60, %48, %cst_35 {dimension_numbers = #tpu.dot_dimension_numbers<[1], [0], [0], [1], [0, 0, 1, 1], [], []>} : vector<8x8xbf16>, vector<8x8xbf16>, vector<8x8xf32> -> vector<8x8xf32>
    %62 = arith.truncf %61 : vector<8x8xf32> to vector<8x8xbf16>
    %63 = vector.extract_strided_slice %3 {offsets = [1, 0, 0], sizes = [1, 8, 32], strides = [1, 1, 1]} : vector<4x8x32xbf16> to vector<1x8x32xbf16>
    %64 = vector.shape_cast %63 : vector<1x8x32xbf16> to vector<8x32xbf16>
    %cst_36 = arith.constant dense<0.000000e+00> : vector<8x32xf32>
    %65 = tpu.matmul %62, %64, %cst_36 {dimension_numbers = #tpu.dot_dimension_numbers<[1], [0], [0], [1], [0, 0, 1, 1], [], []>} : vector<8x8xbf16>, vector<8x32xbf16>, vector<8x32xf32> -> vector<8x32xf32>
    %66 = arith.addf %45, %65 : vector<8x32xf32>
    %67 = vector.extract_strided_slice %13 {offsets = [0, 16], sizes = [8, 8], strides = [1, 1]} : vector<8x32xbf16> to vector<8x8xbf16>
    %68 = vector.extract_strided_slice %19 {offsets = [0, 16], sizes = [8, 8], strides = [1, 1]} : vector<8x32xbf16> to vector<8x8xbf16>
    %69 = vector.extract_strided_slice %25 {offsets = [0, 16], sizes = [8, 8], strides = [1, 1]} : vector<8x32xbf16> to vector<8x8xbf16>
    %cst_37 = arith.constant dense<0.000000e+00> : vector<8x8xf32>
    %70 = tpu.matmul %67, %68, %cst_37 {dimension_numbers = #tpu.dot_dimension_numbers<[1], [1], [0], [0], [0, 0, 1, 0], [], []>} : vector<8x8xbf16>, vector<8x8xbf16>, vector<8x8xf32> -> vector<8x8xf32>
    %cst_38 = arith.constant dense<0xFF800000> : vector<8xf32>
    %71 = vector.multi_reduction <maximumf>, %70, %cst_38 [1] : vector<8x8xf32> to vector<8xf32>
    %72 = vector.shape_cast %71 : vector<8xf32> to vector<8x1xf32>
    %73 = vector.broadcast %72 : vector<8x1xf32> to vector<8x8xf32>
    %74 = arith.subf %70, %73 : vector<8x8xf32>
    %75 = math.exp %74 : vector<8x8xf32>
    %cst_39 = arith.constant dense<0.000000e+00> : vector<8xf32>
    %76 = vector.multi_reduction <add>, %75, %cst_39 [1] : vector<8x8xf32> to vector<8xf32>
    %77 = vector.shape_cast %76 : vector<8xf32> to vector<8x1xf32>
    %78 = tpu.reciprocal %77 {approx = true} : vector<8x1xf32> -> vector<8x1xf32>
    %79 = vector.broadcast %78 : vector<8x1xf32> to vector<8x8xf32>
    %80 = arith.mulf %75, %79 : vector<8x8xf32>
    %81 = arith.truncf %80 : vector<8x8xf32> to vector<8x8xbf16>
    %cst_40 = arith.constant dense<0.000000e+00> : vector<8x8xf32>
    %82 = tpu.matmul %81, %69, %cst_40 {dimension_numbers = #tpu.dot_dimension_numbers<[1], [0], [0], [1], [0, 0, 1, 1], [], []>} : vector<8x8xbf16>, vector<8x8xbf16>, vector<8x8xf32> -> vector<8x8xf32>
    %83 = arith.truncf %82 : vector<8x8xf32> to vector<8x8xbf16>
    %84 = vector.extract_strided_slice %3 {offsets = [2, 0, 0], sizes = [1, 8, 32], strides = [1, 1, 1]} : vector<4x8x32xbf16> to vector<1x8x32xbf16>
    %85 = vector.shape_cast %84 : vector<1x8x32xbf16> to vector<8x32xbf16>
    %cst_41 = arith.constant dense<0.000000e+00> : vector<8x32xf32>
    %86 = tpu.matmul %83, %85, %cst_41 {dimension_numbers = #tpu.dot_dimension_numbers<[1], [0], [0], [1], [0, 0, 1, 1], [], []>} : vector<8x8xbf16>, vector<8x32xbf16>, vector<8x32xf32> -> vector<8x32xf32>
    %87 = arith.addf %66, %86 : vector<8x32xf32>
    %88 = vector.extract_strided_slice %13 {offsets = [0, 24], sizes = [8, 8], strides = [1, 1]} : vector<8x32xbf16> to vector<8x8xbf16>
    %89 = vector.extract_strided_slice %19 {offsets = [0, 24], sizes = [8, 8], strides = [1, 1]} : vector<8x32xbf16> to vector<8x8xbf16>
    %90 = vector.extract_strided_slice %25 {offsets = [0, 24], sizes = [8, 8], strides = [1, 1]} : vector<8x32xbf16> to vector<8x8xbf16>
    %cst_42 = arith.constant dense<0.000000e+00> : vector<8x8xf32>
    %91 = tpu.matmul %88, %89, %cst_42 {dimension_numbers = #tpu.dot_dimension_numbers<[1], [1], [0], [0], [0, 0, 1, 0], [], []>} : vector<8x8xbf16>, vector<8x8xbf16>, vector<8x8xf32> -> vector<8x8xf32>
    %cst_43 = arith.constant dense<0xFF800000> : vector<8xf32>
    %92 = vector.multi_reduction <maximumf>, %91, %cst_43 [1] : vector<8x8xf32> to vector<8xf32>
    %93 = vector.shape_cast %92 : vector<8xf32> to vector<8x1xf32>
    %94 = vector.broadcast %93 : vector<8x1xf32> to vector<8x8xf32>
    %95 = arith.subf %91, %94 : vector<8x8xf32>
    %96 = math.exp %95 : vector<8x8xf32>
    %cst_44 = arith.constant dense<0.000000e+00> : vector<8xf32>
    %97 = vector.multi_reduction <add>, %96, %cst_44 [1] : vector<8x8xf32> to vector<8xf32>
    %98 = vector.shape_cast %97 : vector<8xf32> to vector<8x1xf32>
    %99 = tpu.reciprocal %98 {approx = true} : vector<8x1xf32> -> vector<8x1xf32>
    %100 = vector.broadcast %99 : vector<8x1xf32> to vector<8x8xf32>
    %101 = arith.mulf %96, %100 : vector<8x8xf32>
    %102 = arith.truncf %101 : vector<8x8xf32> to vector<8x8xbf16>
    %cst_45 = arith.constant dense<0.000000e+00> : vector<8x8xf32>
    %103 = tpu.matmul %102, %90, %cst_45 {dimension_numbers = #tpu.dot_dimension_numbers<[1], [0], [0], [1], [0, 0, 1, 1], [], []>} : vector<8x8xbf16>, vector<8x8xbf16>, vector<8x8xf32> -> vector<8x8xf32>
    %104 = arith.truncf %103 : vector<8x8xf32> to vector<8x8xbf16>
    %105 = vector.extract_strided_slice %3 {offsets = [3, 0, 0], sizes = [1, 8, 32], strides = [1, 1, 1]} : vector<4x8x32xbf16> to vector<1x8x32xbf16>
    %106 = vector.shape_cast %105 : vector<1x8x32xbf16> to vector<8x32xbf16>
    %cst_46 = arith.constant dense<0.000000e+00> : vector<8x32xf32>
    %107 = tpu.matmul %104, %106, %cst_46 {dimension_numbers = #tpu.dot_dimension_numbers<[1], [0], [0], [1], [0, 0, 1, 1], [], []>} : vector<8x8xbf16>, vector<8x32xbf16>, vector<8x32xf32> -> vector<8x32xf32>
    %108 = arith.addf %87, %107 : vector<8x32xf32>
    %109 = vector.broadcast %7 : vector<1x32xf32> to vector<8x32xf32>
    %110 = arith.addf %108, %109 : vector<8x32xf32>
    %c0_47 = arith.constant 0 : index
    %c0_48 = arith.constant 0 : index
    %c0_49 = arith.constant 0 : index
    %111 = vector.load %arg12[%c0_47, %c0_48, %c0_49] : memref<1x8x32xf32, #tpu.memory_space<vmem>>, vector<1x8x32xf32>
    %112 = vector.shape_cast %111 : vector<1x8x32xf32> to vector<8x32xf32>
    %113 = vector.shape_cast %110 : vector<8x32xf32> to vector<1x8x32xf32>
    tpu.vector_store %arg12[%c0_47, %c0_48, %c0_49], %113 {strides = array<i32>} : memref<1x8x32xf32, #tpu.memory_space<vmem>>, vector<1x8x32xf32>,
    return
  }
  func.func @transform_0(%arg0: i32) -> (i32, i32, i32) {
    %c0_i32 = arith.constant 0 : i32
    %c0_i32_0 = arith.constant 0 : i32
    %c0_i32_1 = arith.constant 0 : i32
    return %arg0, %c0_i32, %c0_i32_0 : i32, i32, i32
  }
  func.func @transform_1(%arg0: i32) -> (i32, i32, i32) {
    %c0_i32 = arith.constant 0 : i32
    %c0_i32_0 = arith.constant 0 : i32
    %c0_i32_1 = arith.constant 0 : i32
    return %arg0, %c0_i32, %c0_i32_0 : i32, i32, i32
  }
  func.func @transform_2(%arg0: i32) -> (i32, i32, i32) {
    %c0_i32 = arith.constant 0 : i32
    %c0_i32_0 = arith.constant 0 : i32
    %c0_i32_1 = arith.constant 0 : i32
    return %arg0, %c0_i32, %c0_i32_0 : i32, i32, i32
  }
  func.func @transform_3(%arg0: i32) -> (i32, i32) {
    %c0_i32 = arith.constant 0 : i32
    %c0_i32_0 = arith.constant 0 : i32
    %c0_i32_1 = arith.constant 0 : i32
    return %c0_i32, %c0_i32_0 : i32, i32
  }
  func.func @transform_4(%arg0: i32) -> (i32, i32) {
    %c0_i32 = arith.constant 0 : i32
    %c0_i32_0 = arith.constant 0 : i32
    %c0_i32_1 = arith.constant 0 : i32
    return %c0_i32, %c0_i32_0 : i32, i32
  }
  func.func @transform_5(%arg0: i32) -> (i32, i32) {
    %c0_i32 = arith.constant 0 : i32
    %c0_i32_0 = arith.constant 0 : i32
    %c0_i32_1 = arith.constant 0 : i32
    return %c0_i32, %c0_i32_0 : i32, i32
  }
  func.func @transform_6(%arg0: i32) -> (i32, i32) {
    %c0_i32 = arith.constant 0 : i32
    %c0_i32_0 = arith.constant 0 : i32
    %c0_i32_1 = arith.constant 0 : i32
    return %c0_i32, %c0_i32_0 : i32, i32
  }
  func.func @transform_7(%arg0: i32) -> (i32, i32) {
    %c0_i32 = arith.constant 0 : i32
    %c0_i32_0 = arith.constant 0 : i32
    %c0_i32_1 = arith.constant 0 : i32
    return %c0_i32, %c0_i32_0 : i32, i32
  }
  func.func @transform_8(%arg0: i32) -> (i32, i32) {
    %c0_i32 = arith.constant 0 : i32
    %c0_i32_0 = arith.constant 0 : i32
    %c0_i32_1 = arith.constant 0 : i32
    return %c0_i32, %c0_i32_0 : i32, i32
  }
  func.func @transform_9(%arg0: i32) -> (i32, i32, i32) {
    %c0_i32 = arith.constant 0 : i32
    %c0_i32_0 = arith.constant 0 : i32
    %c0_i32_1 = arith.constant 0 : i32
    %c0_i32_2 = arith.constant 0 : i32
    return %c0_i32, %c0_i32_0, %c0_i32_1 : i32, i32, i32
  }
  func.func @transform_10(%arg0: i32) -> (i32, i32) {
    %c0_i32 = arith.constant 0 : i32
    %c0_i32_0 = arith.constant 0 : i32
    %c0_i32_1 = arith.constant 0 : i32
    return %c0_i32, %c0_i32_0 : i32, i32
  }
  func.func @transform_11(%arg0: i32) -> (i32, i32, i32) {
    %c0_i32 = arith.constant 0 : i32
    %c0_i32_0 = arith.constant 0 : i32
    %c0_i32_1 = arith.constant 0 : i32
    return %arg0, %c0_i32, %c0_i32_0 : i32, i32, i32
  }
}

</mosaic_0001>

<llo_original>
// kernel: tpu_custom_call.1
$region0: #{tpu_custom_call.1}
  #allocation0 [shape = 'u32[]', space=smem, size = 0x4, offset = 0x4, fixed_abs, tag = 'smem constant byte address 0x4 - core index']
  #allocation1 [shape = 'u32[72,128]{1,0:T(1,128)}', space=vmem, size = 0x9000, scoped, tag = 'internal scratch']
  %s0 = inlined_call_operand.hbm [shape: bf16[2,8,32], index: 0, kind: input, shape index: {}]
  %s1 = inlined_call_operand.hbm [shape: bf16[2,8,32], index: 1, kind: input, shape index: {}]
  %s2 = inlined_call_operand.hbm [shape: bf16[2,8,32], index: 2, kind: input, shape index: {}]
  %s3 = inlined_call_operand.hbm [shape: bf16[32,32], index: 3, kind: input, shape index: {}]
  %s4 = inlined_call_operand.vmem [shape: f32[1,32], index: 4, kind: input, shape index: {}]
  %s5 = inlined_call_operand.hbm [shape: bf16[32,32], index: 5, kind: input, shape index: {}]
  %s6 = inlined_call_operand.vmem [shape: f32[1,32], index: 6, kind: input, shape index: {}]
  %s7 = inlined_call_operand.hbm [shape: bf16[32,32], index: 7, kind: input, shape index: {}]
  %s8 = inlined_call_operand.vmem [shape: f32[1,32], index: 8, kind: input, shape index: {}]
  %s9 = inlined_call_operand.hbm [shape: bf16[4,8,32], index: 9, kind: input, shape index: {}]
  %s10 = inlined_call_operand.vmem [shape: f32[1,32], index: 10, kind: input, shape index: {}]
  %s11 = inlined_call_operand.hbm [shape: f32[2,8,32], index: 11, kind: output, shape index: {}]
  %s12 = sld [smem:[#allocation0]]
  $region105: #{tpu_custom_call.1} parent=0
    _
  %s14 = ssub.s32 1, %s12
  %s15 = scalar_select 0, %s14, %s12
  $region1: #{tpu_custom_call.1} parent=0
    #allocation2 [shape = 'u8[4096]{0}', space=vmem, size = 0x1000, scoped, tag = 'input window, operand 0']
    #allocation3 [shape = 's32[2]{0}', space=sflag, size = 0x8, scoped, tag = 'scoped memory for tpu_custom_call.1']
    #allocation4 [shape = 's32[2]{0}', space=sflag, size = 0x8, scoped, tag = 'scoped memory for tpu_custom_call.1']
    #allocation5 [shape = 'u8[4096]{0}', space=vmem, size = 0x1000, scoped, tag = 'input window, operand 1']
    #allocation6 [shape = 's32[2]{0}', space=sflag, size = 0x8, scoped, tag = 'scoped memory for tpu_custom_call.1']
    #allocation7 [shape = 'u8[4096]{0}', space=vmem, size = 0x1000, scoped, tag = 'input window, operand 2']
    #allocation8 [shape = 'u8[8192]{0}', space=vmem, size = 0x2000, scoped, tag = 'input window, operand 3, single buffered']
    #allocation9 [shape = 's32[1]{0}', space=sflag, size = 0x4, scoped, tag = 'scoped memory for tpu_custom_call.1']
    #allocation10 [shape = 'u8[8192]{0}', space=vmem, size = 0x2000, scoped, tag = 'input window, operand 5, single buffered']
    #allocation11 [shape = 'u8[8192]{0}', space=vmem, size = 0x2000, scoped, tag = 'input window, operand 7, single buffered']
    #allocation12 [shape = 's32[1]{0}', space=sflag, size = 0x4, scoped, tag = 'scoped memory for tpu_custom_call.1']
    #allocation13 [shape = 'u8[8192]{0}', space=vmem, size = 0x2000, scoped, tag = 'input window, operand 9, single buffered']
    #allocation14 [shape = 'u8[8192]{0}', space=vmem, size = 0x2000, scoped, tag = 'output window, operand 0']
    %16 = vsyncpa [#allocation3], 0
    %s17 = scalar_lea.sflag [#allocation3], 1
    %18 = vsyncpa %s17, 0
    %19 = vsyncpa [#allocation6], 0
    %s20 = scalar_lea.sflag [#allocation6], 1
    %21 = vsyncpa %s20, 0
    %22 = vsyncpa [#allocation9], 0
    %23 = vsyncpa [#allocation12], 0
    %24 = vsyncpa [#allocation4], 0
    %s25 = scalar_lea.sflag [#allocation4], 1
    %26 = vsyncpa %s25, 0
    loop: start=0, step=1, limit=4
    $region2: #{tpu_custom_call.1} parent=1 // loop_pre_header
      _
    $region3: #{tpu_custom_call.1} parent=1 // loop_header
      %s28 = sphi 0, %s32
      %p29 = scmp.ge.s32.totalorder %s28, 4
      %s38 = sphi 0, %s40
      %s41 = sphi 0, %s38
      %s42 = sphi 0, %s41
      %s58 = sphi 0, %s42
      %s64 = sphi 0, %s66
      %s67 = sphi 0, %s64
      %s68 = sphi 0, %s67
      %s84 = sphi 0, %s68
      %s90 = sphi 0, %s92
      %s93 = sphi 0, %s90
      %s94 = sphi 0, %s93
      %s110 = sphi 0, %s94
      %s114 = sphi 0, %s114
      %s116 = sphi 0, %s114
      %s117 = sphi 0, %s116
      %s131 = sphi 0, %s117
      %s135 = sphi 0, %s135
      %s137 = sphi 0, %s135
      %s138 = sphi 0, %s137
      %s152 = sphi 0, %s138
      %s156 = sphi 0, %s156
      %s158 = sphi 0, %s156
      %s159 = sphi 0, %s158
      %s173 = sphi 0, %s159
      %s177 = sphi 0, %s177
      %s179 = sphi 0, %s177
      %s180 = sphi 0, %s179
      %s194 = sphi 0, %s180
      %s198 = sphi 0, %s198
      %s200 = sphi 0, %s198
      %s201 = sphi 0, %s200
      %s215 = sphi 0, %s201
      %s219 = sphi 0, %s219
      %s221 = sphi 0, %s219
      %s222 = sphi 0, %s221
      %s236 = sphi 0, %s222
      %s240 = sphi 0, %s240
      %s242 = sphi 0, %s240
      %s243 = sphi 0, %s242
      %s257 = sphi 0, %s243
      %s261 = sphi 0, %s261
      %s263 = sphi 0, %s261
      %s264 = sphi 0, %s263
      %s278 = sphi 0, %s264
      %s284 = sphi 0, %s286
      %s287 = sphi 0, %s284
      %s288 = sphi 0, %s287
      %s304 = sphi 0, %s288
    $region4: #{tpu_custom_call.1} parent=1 // loop_header_branch
      %31 = sbr.rel (%p29) target = $region8
    $region5: #{tpu_custom_call.1} parent=1 // loop_body
      %s33 = ssub.s32 %s28, 1
      %s34 = ssub.s32 %s28, 2
      %s35 = sadd.s32 %s28, 1
      %s36 = ssub.s32 %s28, %s35
      %p37 = scmp.eq.s32.totalorder %s36, 0
      %s39 = sadd.s32 %s38, 1
      %s40 = scalar_select %p37, %s38, %s39
      %p43 = pneg %p37
      %p44 = scmp.eq.s32.totalorder %s28, 1
      %p45 = por %p43, %p44
      %p46 = scmp.ne.s32.totalorder %s38, %s41
      %p47 = scmp.eq.s32.totalorder %s28, 0
      %p48 = por %p46, %p47
      %p49 = scmp.ne.s32.totalorder %s38, %s41
      %p50 = scmp.eq.s32.totalorder %s33, 1
      %p51 = por %p49, %p50
      %p52 = scmp.ne.s32.totalorder %s41, %s42
      %p53 = scmp.eq.s32.totalorder %s33, 0
      %p54 = por %p52, %p53
      %p55 = scmp.ne.s32.totalorder %s41, %s42
      %p56 = scmp.eq.s32.totalorder %s34, 1
      %p57 = por %p55, %p56
      %p59 = scmp.ne.s32.totalorder %s42, %s58
      %p60 = scmp.eq.s32.totalorder %s34, 0
      %p61 = por %p59, %p60
      %s62 = ssub.s32 %s28, %s35
      %p63 = scmp.eq.s32.totalorder %s62, 0
      %s65 = sadd.s32 %s64, 1
      %s66 = scalar_select %p63, %s64, %s65
      %p69 = pneg %p63
      %p70 = scmp.eq.s32.totalorder %s28, 1
      %p71 = por %p69, %p70
      %p72 = scmp.ne.s32.totalorder %s64, %s67
      %p73 = scmp.eq.s32.totalorder %s28, 0
      %p74 = por %p72, %p73
      %p75 = scmp.ne.s32.totalorder %s64, %s67
      %p76 = scmp.eq.s32.totalorder %s33, 1
      %p77 = por %p75, %p76
      %p78 = scmp.ne.s32.totalorder %s67, %s68
      %p79 = scmp.eq.s32.totalorder %s33, 0
      %p80 = por %p78, %p79
      %p81 = scmp.ne.s32.totalorder %s67, %s68
      %p82 = scmp.eq.s32.totalorder %s34, 1
      %p83 = por %p81, %p82
      %p85 = scmp.ne.s32.totalorder %s68, %s84
      %p86 = scmp.eq.s32.totalorder %s34, 0
      %p87 = por %p85, %p86
      %s88 = ssub.s32 %s28, %s35
      %p89 = scmp.eq.s32.totalorder %s88, 0
      %s91 = sadd.s32 %s90, 1
      %s92 = scalar_select %p89, %s90, %s91
      %p95 = pneg %p89
      %p96 = scmp.eq.s32.totalorder %s28, 1
      %p97 = por %p95, %p96
      %p98 = scmp.ne.s32.totalorder %s90, %s93
      %p99 = scmp.eq.s32.totalorder %s28, 0
      %p100 = por %p98, %p99
      %p101 = scmp.ne.s32.totalorder %s90, %s93
      %p102 = scmp.eq.s32.totalorder %s33, 1
      %p103 = por %p101, %p102
      %p104 = scmp.ne.s32.totalorder %s93, %s94
      %p105 = scmp.eq.s32.totalorder %s33, 0
      %p106 = por %p104, %p105
      %p107 = scmp.ne.s32.totalorder %s93, %s94
      %p108 = scmp.eq.s32.totalorder %s34, 1
      %p109 = por %p107, %p108
      %p111 = scmp.ne.s32.totalorder %s94, %s110
      %p112 = scmp.eq.s32.totalorder %s34, 0
      %p113 = por %p111, %p112
      %s115 = sadd.s32 %s114, 1
      %p118 = scmp.eq.s32.totalorder %s28, 1
      %p119 = scmp.ne.s32.totalorder %s114, %s116
      %p120 = scmp.eq.s32.totalorder %s28, 0
      %p121 = por %p119, %p120
      %p122 = scmp.ne.s32.totalorder %s114, %s116
      %p123 = scmp.eq.s32.totalorder %s33, 1
      %p124 = por %p122, %p123
      %p125 = scmp.ne.s32.totalorder %s116, %s117
      %p126 = scmp.eq.s32.totalorder %s33, 0
      %p127 = por %p125, %p126
      %p128 = scmp.ne.s32.totalorder %s116, %s117
      %p129 = scmp.eq.s32.totalorder %s34, 1
      %p130 = por %p128, %p129
      %p132 = scmp.ne.s32.totalorder %s117, %s131
      %p133 = scmp.eq.s32.totalorder %s34, 0
      %p134 = por %p132, %p133
      %s136 = sadd.s32 %s135, 1
      %p139 = scmp.eq.s32.totalorder %s28, 1
      %p140 = scmp.ne.s32.totalorder %s135, %s137
      %p141 = scmp.eq.s32.totalorder %s28, 0
      %p142 = por %p140, %p141
      %p143 = scmp.ne.s32.totalorder %s135, %s137
      %p144 = scmp.eq.s32.totalorder %s33, 1
      %p145 = por %p143, %p144
      %p146 = scmp.ne.s32.totalorder %s137, %s138
      %p147 = scmp.eq.s32.totalorder %s33, 0
      %p148 = por %p146, %p147
      %p149 = scmp.ne.s32.totalorder %s137, %s138
      %p150 = scmp.eq.s32.totalorder %s34, 1
      %p151 = por %p149, %p150
      %p153 = scmp.ne.s32.totalorder %s138, %s152
      %p154 = scmp.eq.s32.totalorder %s34, 0
      %p155 = por %p153, %p154
      %s157 = sadd.s32 %s156, 1
      %p160 = scmp.eq.s32.totalorder %s28, 1
      %p161 = scmp.ne.s32.totalorder %s156, %s158
      %p162 = scmp.eq.s32.totalorder %s28, 0
      %p163 = por %p161, %p162
      %p164 = scmp.ne.s32.totalorder %s156, %s158
      %p165 = scmp.eq.s32.totalorder %s33, 1
      %p166 = por %p164, %p165
      %p167 = scmp.ne.s32.totalorder %s158, %s159
      %p168 = scmp.eq.s32.totalorder %s33, 0
      %p169 = por %p167, %p168
      %p170 = scmp.ne.s32.totalorder %s158, %s159
      %p171 = scmp.eq.s32.totalorder %s34, 1
      %p172 = por %p170, %p171
      %p174 = scmp.ne.s32.totalorder %s159, %s173
      %p175 = scmp.eq.s32.totalorder %s34, 0
      %p176 = por %p174, %p175
      %s178 = sadd.s32 %s177, 1
      %p181 = scmp.eq.s32.totalorder %s28, 1
      %p182 = scmp.ne.s32.totalorder %s177, %s179
      %p183 = scmp.eq.s32.totalorder %s28, 0
      %p184 = por %p182, %p183
      %p185 = scmp.ne.s32.totalorder %s177, %s179
      %p186 = scmp.eq.s32.totalorder %s33, 1
      %p187 = por %p185, %p186
      %p188 = scmp.ne.s32.totalorder %s179, %s180
      %p189 = scmp.eq.s32.totalorder %s33, 0
      %p190 = por %p188, %p189
      %p191 = scmp.ne.s32.totalorder %s179, %s180
      %p192 = scmp.eq.s32.totalorder %s34, 1
      %p193 = por %p191, %p192
      %p195 = scmp.ne.s32.totalorder %s180, %s194
      %p196 = scmp.eq.s32.totalorder %s34, 0
      %p197 = por %p195, %p196
      %s199 = sadd.s32 %s198, 1
      %p202 = scmp.eq.s32.totalorder %s28, 1
      %p203 = scmp.ne.s32.totalorder %s198, %s200
      %p204 = scmp.eq.s32.totalorder %s28, 0
      %p205 = por %p203, %p204
      %p206 = scmp.ne.s32.totalorder %s198, %s200
      %p207 = scmp.eq.s32.totalorder %s33, 1
      %p208 = por %p206, %p207
      %p209 = scmp.ne.s32.totalorder %s200, %s201
      %p210 = scmp.eq.s32.totalorder %s33, 0
      %p211 = por %p209, %p210
      %p212 = scmp.ne.s32.totalorder %s200, %s201
      %p213 = scmp.eq.s32.totalorder %s34, 1
      %p214 = por %p212, %p213
      %p216 = scmp.ne.s32.totalorder %s201, %s215
      %p217 = scmp.eq.s32.totalorder %s34, 0
      %p218 = por %p216, %p217
      %s220 = sadd.s32 %s219, 1
      %p223 = scmp.eq.s32.totalorder %s28, 1
      %p224 = scmp.ne.s32.totalorder %s219, %s221
      %p225 = scmp.eq.s32.totalorder %s28, 0
      %p226 = por %p224, %p225
      %p227 = scmp.ne.s32.totalorder %s219, %s221
      %p228 = scmp.eq.s32.totalorder %s33, 1
      %p229 = por %p227, %p228
      %p230 = scmp.ne.s32.totalorder %s221, %s222
      %p231 = scmp.eq.s32.totalorder %s33, 0
      %p232 = por %p230, %p231
      %p233 = scmp.ne.s32.totalorder %s221, %s222
      %p234 = scmp.eq.s32.totalorder %s34, 1
      %p235 = por %p233, %p234
      %p237 = scmp.ne.s32.totalorder %s222, %s236
      %p238 = scmp.eq.s32.totalorder %s34, 0
      %p239 = por %p237, %p238
      %s241 = sadd.s32 %s240, 1
      %p244 = scmp.eq.s32.totalorder %s28, 1
      %p245 = scmp.ne.s32.totalorder %s240, %s242
      %p246 = scmp.eq.s32.totalorder %s28, 0
      %p247 = por %p245, %p246
      %p248 = scmp.ne.s32.totalorder %s240, %s242
      %p249 = scmp.eq.s32.totalorder %s33, 1
      %p250 = por %p248, %p249
      %p251 = scmp.ne.s32.totalorder %s242, %s243
      %p252 = scmp.eq.s32.totalorder %s33, 0
      %p253 = por %p251, %p252
      %p254 = scmp.ne.s32.totalorder %s242, %s243
      %p255 = scmp.eq.s32.totalorder %s34, 1
      %p256 = por %p254, %p255
      %p258 = scmp.ne.s32.totalorder %s243, %s257
      %p259 = scmp.eq.s32.totalorder %s34, 0
      %p260 = por %p258, %p259
      %s262 = sadd.s32 %s261, 1
      %p265 = scmp.eq.s32.totalorder %s28, 1
      %p266 = scmp.ne.s32.totalorder %s261, %s263
      %p267 = scmp.eq.s32.totalorder %s28, 0
      %p268 = por %p266, %p267
      %p269 = scmp.ne.s32.totalorder %s261, %s263
      %p270 = scmp.eq.s32.totalorder %s33, 1
      %p271 = por %p269, %p270
      %p272 = scmp.ne.s32.totalorder %s263, %s264
      %p273 = scmp.eq.s32.totalorder %s33, 0
      %p274 = por %p272, %p273
      %p275 = scmp.ne.s32.totalorder %s263, %s264
      %p276 = scmp.eq.s32.totalorder %s34, 1
      %p277 = por %p275, %p276
      %p279 = scmp.ne.s32.totalorder %s264, %s278
      %p280 = scmp.eq.s32.totalorder %s34, 0
      %p281 = por %p279, %p280
      %s282 = ssub.s32 %s28, %s35
      %p283 = scmp.eq.s32.totalorder %s282, 0
      %s285 = sadd.s32 %s284, 1
      %s286 = scalar_select %p283, %s284, %s285
      %p289 = pneg %p283
      %p290 = scmp.eq.s32.totalorder %s28, 1
      %p291 = por %p289, %p290
      %p292 = scmp.ne.s32.totalorder %s284, %s287
      %p293 = scmp.eq.s32.totalorder %s28, 0
      %p294 = por %p292, %p293
      %p295 = scmp.ne.s32.totalorder %s284, %s287
      %p296 = scmp.eq.s32.totalorder %s33, 1
      %p297 = por %p295, %p296
      %p298 = scmp.ne.s32.totalorder %s287, %s288
      %p299 = scmp.eq.s32.totalorder %s33, 0
      %p300 = por %p298, %p299
      %p301 = scmp.ne.s32.totalorder %s287, %s288
      %p302 = scmp.eq.s32.totalorder %s34, 1
      %p303 = por %p301, %p302
      %p305 = scmp.ne.s32.totalorder %s288, %s304
      %p306 = scmp.eq.s32.totalorder %s34, 0
      %p307 = por %p305, %p306
      %p308 = scmp.le.s32.totalorder 1, %s28
      %p309 = scmp.lt.s32.totalorder %s28, 3
      %p310 = pnand %p308, %p309
      %p311 = pneg %p310
      // Predicated region
      $region9: #{tpu_custom_call.1} parent=5 // pred_check
        _
      $region10: #{tpu_custom_call.1} parent=5 // pred_check_branch
        %313 = sbr.rel (%p310) target = $region12
      $region11: #{tpu_custom_call.1} parent=5 // pred_region
        %s314 = ssub.s32 %s28, 1
        // Predicated region
        $region13: #{tpu_custom_call.1} parent=11 // pred_check
          %p315 = pneg %p127
        $region14: #{tpu_custom_call.1} parent=11 // pred_check_branch
          %317 = sbr.rel (%p315) target = $region16
        $region15: #{tpu_custom_call.1} parent=11 // pred_region
          %319 = vsyncadd [#allocation9], 0
          %s320 = sshll.u32 %s3, 4
          %s321 = int_to_ptr.hbm [resolvable:$true] %s320
          %s322 = sshll.u32 [#allocation8], 4
          %s323 = int_to_ptr.vmem [resolvable:$true] %s322
          %328 = dma.hbm_to_vmem [thread:$0]  %s321, 256, %s323, [#allocation9], 64, 64, 4
        $region16: #{tpu_custom_call.1} parent=11 // pred_fallthru
          _
        // Predicated region
        $region17: #{tpu_custom_call.1} parent=11 // pred_check
          %p329 = pneg %p148
        $region18: #{tpu_custom_call.1} parent=11 // pred_check_branch
          %331 = sbr.rel (%p329) target = $region20
        $region19: #{tpu_custom_call.1} parent=11 // pred_region
          _
        $region20: #{tpu_custom_call.1} parent=11 // pred_fallthru
          _
        // Predicated region
        $region21: #{tpu_custom_call.1} parent=11 // pred_check
          %p332 = pneg %p169
        $region22: #{tpu_custom_call.1} parent=11 // pred_check_branch
          %334 = sbr.rel (%p332) target = $region24
        $region23: #{tpu_custom_call.1} parent=11 // pred_region
          %336 = vsyncadd [#allocation9], 0
          %s337 = sshll.u32 %s5, 4
          %s338 = int_to_ptr.hbm [resolvable:$true] %s337
          %s339 = sshll.u32 [#allocation10], 4
          %s340 = int_to_ptr.vmem [resolvable:$true] %s339
          %345 = dma.hbm_to_vmem [thread:$0]  %s338, 256, %s340, [#allocation9], 64, 64, 4
        $region24: #{tpu_custom_call.1} parent=11 // pred_fallthru
          _
        // Predicated region
        $region25: #{tpu_custom_call.1} parent=11 // pred_check
          %p346 = pneg %p190
        $region26: #{tpu_custom_call.1} parent=11 // pred_check_branch
          %348 = sbr.rel (%p346) target = $region28
        $region27: #{tpu_custom_call.1} parent=11 // pred_region
          _
        $region28: #{tpu_custom_call.1} parent=11 // pred_fallthru
          _
        // Predicated region
        $region29: #{tpu_custom_call.1} parent=11 // pred_check
          %p349 = pneg %p211
        $region30: #{tpu_custom_call.1} parent=11 // pred_check_branch
          %351 = sbr.rel (%p349) target = $region32
        $region31: #{tpu_custom_call.1} parent=11 // pred_region
          %353 = vsyncadd [#allocation12], 0
          %s354 = sshll.u32 %s7, 4
          %s355 = int_to_ptr.hbm [resolvable:$true] %s354
          %s356 = sshll.u32 [#allocation11], 4
          %s357 = int_to_ptr.vmem [resolvable:$true] %s356
          %362 = dma.hbm_to_vmem [thread:$0]  %s355, 256, %s357, [#allocation12], 64, 64, 4
        $region32: #{tpu_custom_call.1} parent=11 // pred_fallthru
          _
        // Predicated region
        $region33: #{tpu_custom_call.1} parent=11 // pred_check
          %p363 = pneg %p232
        $region34: #{tpu_custom_call.1} parent=11 // pred_check_branch
          %365 = sbr.rel (%p363) target = $region36
        $region35: #{tpu_custom_call.1} parent=11 // pred_region
          _
        $region36: #{tpu_custom_call.1} parent=11 // pred_fallthru
          _
        // Predicated region
        $region37: #{tpu_custom_call.1} parent=11 // pred_check
          %p366 = pneg %p253
        $region38: #{tpu_custom_call.1} parent=11 // pred_check_branch
          %368 = sbr.rel (%p366) target = $region40
        $region39: #{tpu_custom_call.1} parent=11 // pred_region
          %370 = vsyncadd [#allocation12], 0
          %s371 = sshll.u32 %s9, 4
          %s372 = int_to_ptr.hbm [resolvable:$true] %s371
          %s373 = sshll.u32 [#allocation13], 4
          %s374 = int_to_ptr.vmem [resolvable:$true] %s373
          %379 = dma.hbm_to_vmem [thread:$0]  %s372, 256, %s374, [#allocation12], 64, 64, 4
        $region40: #{tpu_custom_call.1} parent=11 // pred_fallthru
          _
        // Predicated region
        $region41: #{tpu_custom_call.1} parent=11 // pred_check
          %p380 = pneg %p274
        $region42: #{tpu_custom_call.1} parent=11 // pred_check_branch
          %382 = sbr.rel (%p380) target = $region44
        $region43: #{tpu_custom_call.1} parent=11 // pred_region
          _
        $region44: #{tpu_custom_call.1} parent=11 // pred_fallthru
          _
      $region12: #{tpu_custom_call.1} parent=5 // pred_fallthru
        _
      %p383 = scmp.lt.s32.totalorder %s28, 2
      // Predicated region
      $region45: #{tpu_custom_call.1} parent=5 // pred_check
        %p384 = pneg %p383
      $region46: #{tpu_custom_call.1} parent=5 // pred_check_branch
        %386 = sbr.rel (%p384) target = $region48
      $region47: #{tpu_custom_call.1} parent=5 // pred_region
        // Predicated region
        $region49: #{tpu_custom_call.1} parent=47 // pred_check
          %p387 = pneg %p48
        $region50: #{tpu_custom_call.1} parent=47 // pred_check_branch
          %389 = sbr.rel (%p387) target = $region52
        $region51: #{tpu_custom_call.1} parent=47 // pred_region
          %s390 = sand.u32 %s38, 1
          %s391 = scalar_lea.sflag [#allocation3], %s390
          %s392 = sand.u32 %s38, 1
          %s393 = smul.addr %s392, 4
          %s394 = scalar_lea.vmem [#allocation2], %s393
          %396 = vsyncadd %s391, 0
          %s397 = smul.addr %s28, 4
          %s398 = scalar_lea.hbm %s0, %s397
          %s400 = sshll.u32 %s398, 4
          %s401 = int_to_ptr.hbm [resolvable:$true] %s400
          %s402 = sshll.u32 %s394, 4
          %s403 = int_to_ptr.vmem [resolvable:$true] %s402
          %405 = dma.hbm_to_vmem [thread:$0]  %s401, 64, %s403, %s391
        $region52: #{tpu_custom_call.1} parent=47 // pred_fallthru
          _
        // Predicated region
        $region53: #{tpu_custom_call.1} parent=47 // pred_check
          %p406 = pneg %p74
        $region54: #{tpu_custom_call.1} parent=47 // pred_check_branch
          %408 = sbr.rel (%p406) target = $region56
        $region55: #{tpu_custom_call.1} parent=47 // pred_region
          %s409 = sand.u32 %s28, 1
          %s410 = scalar_lea.sflag [#allocation6], %s409
          %s411 = sand.u32 %s64, 1
          %s412 = smul.addr %s411, 4
          %s413 = scalar_lea.vmem [#allocation5], %s412
          %415 = vsyncadd %s410, 0
          %s416 = smul.addr %s28, 4
          %s417 = scalar_lea.hbm %s1, %s416
          %s419 = sshll.u32 %s417, 4
          %s420 = int_to_ptr.hbm [resolvable:$true] %s419
          %s421 = sshll.u32 %s413, 4
          %s422 = int_to_ptr.vmem [resolvable:$true] %s421
          %424 = dma.hbm_to_vmem [thread:$0]  %s420, 64, %s422, %s410
        $region56: #{tpu_custom_call.1} parent=47 // pred_fallthru
          _
        // Predicated region
        $region57: #{tpu_custom_call.1} parent=47 // pred_check
          %p425 = pneg %p100
        $region58: #{tpu_custom_call.1} parent=47 // pred_check_branch
          %427 = sbr.rel (%p425) target = $region60
        $region59: #{tpu_custom_call.1} parent=47 // pred_region
          %s428 = sand.u32 %s28, 1
          %s429 = scalar_lea.sflag [#allocation6], %s428
          %s430 = sand.u32 %s90, 1
          %s431 = smul.addr %s430, 4
          %s432 = scalar_lea.vmem [#allocation7], %s431
          %434 = vsyncadd %s429, 0
          %s435 = smul.addr %s28, 4
          %s436 = scalar_lea.hbm %s2, %s435
          %s438 = sshll.u32 %s436, 4
          %s439 = int_to_ptr.hbm [resolvable:$true] %s438
          %s440 = sshll.u32 %s432, 4
          %s441 = int_to_ptr.vmem [resolvable:$true] %s440
          %443 = dma.hbm_to_vmem [thread:$0]  %s439, 64, %s441, %s429
        $region60: #{tpu_custom_call.1} parent=47 // pred_fallthru
          _
      $region48: #{tpu_custom_call.1} parent=5 // pred_fallthru
        _
      %p444 = scmp.le.s32.totalorder 1, %s28
      %p445 = scmp.lt.s32.totalorder %s28, 3
      %p446 = pnand %p444, %p445
      %p447 = pneg %p446
      // Predicated region
      $region61: #{tpu_custom_call.1} parent=5 // pred_check
        _
      $region62: #{tpu_custom_call.1} parent=5 // pred_check_branch
        %449 = sbr.rel (%p446) target = $region64
      $region63: #{tpu_custom_call.1} parent=5 // pred_region
        %s450 = ssub.s32 %s28, 1
        %s451 = sand.u32 %s41, 1
        %s452 = scalar_lea.sflag [#allocation3], %s451
        %s453 = sand.u32 %s41, 1
        %s454 = smul.addr %s453, 4
        %s455 = scalar_lea.vmem [#allocation2], %s454
        // Predicated region
        $region65: #{tpu_custom_call.1} parent=63 // pred_check
          %p456 = pneg %p54
        $region66: #{tpu_custom_call.1} parent=63 // pred_check_branch
          %458 = sbr.rel (%p456) target = $region68
        $region67: #{tpu_custom_call.1} parent=63 // pred_region
          %460 = dma.done %s452, 64
        $region68: #{tpu_custom_call.1} parent=63 // pred_fallthru
          _
        %s461 = sand.u32 %s33, 1
        %s462 = scalar_lea.sflag [#allocation6], %s461
        %s463 = sand.u32 %s67, 1
        %s464 = smul.addr %s463, 4
        %s465 = scalar_lea.vmem [#allocation5], %s464
        // Predicated region
        $region69: #{tpu_custom_call.1} parent=63 // pred_check
          %p466 = pneg %p80
        $region70: #{tpu_custom_call.1} parent=63 // pred_check_branch
          %468 = sbr.rel (%p466) target = $region72
        $region71: #{tpu_custom_call.1} parent=63 // pred_region
          %470 = dma.done %s462, 64
        $region72: #{tpu_custom_call.1} parent=63 // pred_fallthru
          _
        %s471 = sand.u32 %s33, 1
        %s472 = scalar_lea.sflag [#allocation6], %s471
        %s473 = sand.u32 %s93, 1
        %s474 = smul.addr %s473, 4
        %s475 = scalar_lea.vmem [#allocation7], %s474
        // Predicated region
        $region73: #{tpu_custom_call.1} parent=63 // pred_check
          %p476 = pneg %p106
        $region74: #{tpu_custom_call.1} parent=63 // pred_check_branch
          %478 = sbr.rel (%p476) target = $region76
        $region75: #{tpu_custom_call.1} parent=63 // pred_region
          %480 = dma.done %s472, 64
        $region76: #{tpu_custom_call.1} parent=63 // pred_fallthru
          _
        // Predicated region
        $region77: #{tpu_custom_call.1} parent=63 // pred_check
          %p481 = pneg %p127
        $region78: #{tpu_custom_call.1} parent=63 // pred_check_branch
          %483 = sbr.rel (%p481) target = $region80
        $region79: #{tpu_custom_call.1} parent=63 // pred_region
          %485 = dma.done [#allocation9], 256
        $region80: #{tpu_custom_call.1} parent=63 // pred_fallthru
          _
        // Predicated region
        $region81: #{tpu_custom_call.1} parent=63 // pred_check
          %p486 = pneg %p169
        $region82: #{tpu_custom_call.1} parent=63 // pred_check_branch
          %488 = sbr.rel (%p486) target = $region84
        $region83: #{tpu_custom_call.1} parent=63 // pred_region
          %490 = dma.done [#allocation9], 256
        $region84: #{tpu_custom_call.1} parent=63 // pred_fallthru
          _
        // Predicated region
        $region85: #{tpu_custom_call.1} parent=63 // pred_check
          %p491 = pneg %p211
        $region86: #{tpu_custom_call.1} parent=63 // pred_check_branch
          %493 = sbr.rel (%p491) target = $region88
        $region87: #{tpu_custom_call.1} parent=63 // pred_region
          %495 = dma.done [#allocation12], 256
        $region88: #{tpu_custom_call.1} parent=63 // pred_fallthru
          _
        // Predicated region
        $region89: #{tpu_custom_call.1} parent=63 // pred_check
          %p496 = pneg %p253
        $region90: #{tpu_custom_call.1} parent=63 // pred_check_branch
          %498 = sbr.rel (%p496) target = $region92
        $region91: #{tpu_custom_call.1} parent=63 // pred_region
          %500 = dma.done [#allocation12], 256
        $region92: #{tpu_custom_call.1} parent=63 // pred_fallthru
          _
        %s501 = sand.u32 %s41, 1
        %s502 = scalar_lea.sflag [#allocation3], %s501
        %s503 = sand.u32 %s41, 1
        %s504 = smul.addr %s503, 4
        %s505 = scalar_lea.vmem [#allocation2], %s504
        %p506 = pneg %p54
        %p507 = pneg %p51
        %s508 = sand.u32 %s33, 1
        %s509 = scalar_lea.sflag [#allocation6], %s508
        %s510 = sand.u32 %s67, 1
        %s511 = smul.addr %s510, 4
        %s512 = scalar_lea.vmem [#allocation5], %s511
        %p513 = pneg %p80
        %p514 = pneg %p77
        %s515 = sand.u32 %s33, 1
        %s516 = scalar_lea.sflag [#allocation6], %s515
        %s517 = sand.u32 %s93, 1
        %s518 = smul.addr %s517, 4
        %s519 = scalar_lea.vmem [#allocation7], %s518
        %p520 = pneg %p106
        %p521 = pneg %p103
        %p522 = pneg %p127
        %p523 = pneg %p124
        %p524 = pneg %p148
        %p525 = pneg %p145
        %p526 = pneg %p169
        %p527 = pneg %p166
        %p528 = pneg %p190
        %p529 = pneg %p187
        %p530 = pneg %p211
        %p531 = pneg %p208
        %p532 = pneg %p232
        %p533 = pneg %p229
        %p534 = pneg %p253
        %p535 = pneg %p250
        %p536 = pneg %p274
        %p537 = pneg %p271
        %p538 = pneg %p300
        %p539 = pneg %p297
        %s540 = sand.u32 %s287, 1
        %s541 = scalar_lea.sflag [#allocation4], %s540
        %s542 = sand.u32 %s287, 1
        %s543 = smul.addr %s542, 8
        %s544 = scalar_lea.vmem [#allocation14], %s543
        %v546 = vld [vmem:[#allocation8] sm:$0xf]
        %v547 = vld [vmem:[#allocation8 + $0x4] sm:$0xf]
        %v548 = vld [vmem:[#allocation8 + $0x8] sm:$0xf]
        %v549 = vld [vmem:[#allocation8 + $0xc] sm:$0xf]
        %v550 = vld [vmem:[#allocation10] sm:$0xf]
        %v551 = vld [vmem:[#allocation10 + $0x4] sm:$0xf]
        %v552 = vld [vmem:[#allocation10 + $0x8] sm:$0xf]
        %v553 = vld [vmem:[#allocation10 + $0xc] sm:$0xf]
        %v554 = vld [vmem:[#allocation11] sm:$0xf]
        %v555 = vld [vmem:[#allocation11 + $0x4] sm:$0xf]
        %v556 = vld [vmem:[#allocation11 + $0x8] sm:$0xf]
        %v557 = vld [vmem:[#allocation11 + $0xc] sm:$0xf]
        %v558 = vld [vmem:[#allocation13] sm:$0xf]
        %v559 = vld [vmem:[#allocation13 + $0x4] sm:$0xf]
        %v560 = vld [vmem:[#allocation13 + $0x8] sm:$0xf]
        %v561 = vld [vmem:[#allocation13 + $0xc] sm:$0xf]
        %v562 = vld [vmem:[%s4] sm:$0x1]
        %v563 = vld [vmem:[%s6] sm:$0x1]
        %v564 = vld [vmem:[%s8] sm:$0x1]
        %v565 = vld [vmem:[%s10] sm:$0x1]
        %v566 = vld [vmem:[%s455] sm:$0xf]
        %v568 = vperm.slane %v562, 0
        %v574 = vunpack.c.l.b16 %v546
        %v575 = vunpack.c.l.b16 %v547
        %v576 = vunpack.c.l.b16 %v548
        %v577 = vunpack.c.l.b16 %v549
        %v578 = vpack.c.b16 %v575, %v574
        %v579 = vpack.c.b16 %v577, %v576
        %vm582 = vcmask 261120
        %v584 = vsel %vm582, %v566, 0
        %586 = vmatpush.bf16.msra.mxu0 0
        %587 = vmatpush.bf16.msra.mxu0 0
        %588 = vmatpush.bf16.msra.mxu0 0
        %589 = vmatpush.bf16.msra.mxu0 0
        %590 = vmatpush.bf16.msra.mxu0 0
        %591 = vmatpush.bf16.msra.mxu0 0
        %592 = vmatpush.bf16.msra.mxu0 %v579
        %593 = vmatpush.bf16.msra.mxu0 %v578
        %594 = vmatmul.bf16.gmra.mxu0 %v584
        %v595 = vpop.f32.mrf.mxu0
        %v596 = vadd.f32 %v568, %v595
        %v597 = vpop.f32.mrf.mxu0
        %598 = vdwg.mxu0
        %v599 = vpack.c.bf16 %v596, %v596
        %v600 = vld [vmem:[%s465] sm:$0xf]
        %v602 = vperm.slane %v563, 0
        %v608 = vunpack.c.l.b16 %v550
        %v609 = vunpack.c.l.b16 %v551
        %v610 = vunpack.c.l.b16 %v552
        %v611 = vunpack.c.l.b16 %v553
        %v612 = vpack.c.b16 %v609, %v608
        %v613 = vpack.c.b16 %v611, %v610
        %v617 = vsel %vm582, %v600, 0
        %619 = vmatpush.bf16.msra.mxu0 0
        %620 = vmatpush.bf16.msra.mxu0 0
        %621 = vmatpush.bf16.msra.mxu0 0
        %622 = vmatpush.bf16.msra.mxu0 0
        %623 = vmatpush.bf16.msra.mxu0 0
        %624 = vmatpush.bf16.msra.mxu0 0
        %625 = vmatpush.bf16.msra.mxu0 %v613
        %626 = vmatpush.bf16.msra.mxu0 %v612
        %627 = vmatmul.bf16.gmra.mxu0 %v617
        %v628 = vpop.f32.mrf.mxu0
        %v629 = vadd.f32 %v602, %v628
        %v630 = vpop.f32.mrf.mxu0
        %631 = vdwg.mxu0
        %v632 = vpack.c.bf16 %v629, %v629
        %v633 = vld [vmem:[%s475] sm:$0xf]
        %v635 = vperm.slane %v564, 0
        %v641 = vunpack.c.l.b16 %v554
        %v642 = vunpack.c.l.b16 %v555
        %v643 = vunpack.c.l.b16 %v556
        %v644 = vunpack.c.l.b16 %v557
        %v645 = vpack.c.b16 %v642, %v641
        %v646 = vpack.c.b16 %v644, %v643
        %v650 = vsel %vm582, %v633, 0
        %652 = vmatpush.bf16.msra.mxu0 0
        %653 = vmatpush.bf16.msra.mxu0 0
        %654 = vmatpush.bf16.msra.mxu0 0
        %655 = vmatpush.bf16.msra.mxu0 0
        %656 = vmatpush.bf16.msra.mxu0 0
        %657 = vmatpush.bf16.msra.mxu0 0
        %658 = vmatpush.bf16.msra.mxu0 %v646
        %659 = vmatpush.bf16.msra.mxu0 %v645
        %660 = vmatmul.bf16.gmra.mxu0 %v650
        %v661 = vpop.f32.mrf.mxu0
        %v662 = vadd.f32 %v635, %v661
        %v663 = vpop.f32.mrf.mxu0
        %664 = vdwg.mxu0
        %v665 = vpack.c.bf16 %v662, %v662
        %vm666 = vcmask 64512
        %v668 = vsel %vm666, %v599, 0
        %v671 = vsel %vm666, %v632, 0
        %673 = vmatpush.bf16.xpose.msra.mxu0 0
        %674 = vmatpush.bf16.xpose.msra.mxu0 0
        %675 = vmatpush.bf16.xpose.msra.mxu0 0
        %676 = vmatpush.bf16.xpose.msra.mxu0 0
        %677 = vmatpush.bf16.xpose.msra.mxu0 0
        %678 = vmatpush.bf16.xpose.msra.mxu0 0
        %679 = vmatpush.bf16.xpose.msra.mxu0 0
        %680 = vmatpush.bf16.xpose.msra.mxu0 %v671
        %681 = vmatmul.bf16.gmra.mxu0 %v668
        %v682 = vpop.f32.mrf.mxu0
        %v683 = vadd.f32 0.0, %v682
        %v684 = vpop.f32.mrf.mxu0
        %685 = vdwg.mxu0
        %v686 = vsel %vm666, %v683, -inf
        %687 = vmax.xlane.f32.xlu0 %v686
        %v688 = vpop.xlane.xlu0 %687
        %v689 = vsub.f32 %v683, %v688
        %v690 = vmul.f32 %v689, 1.442695
        %v691 = vpow.pop %v690
        %v692 = vsel %vm666, %v691, 0.0
        %693 = vadd.xlane.f32.xlu0 %v692
        %v694 = vpop.xlane.xlu0 %693
        %v695 = vrcp.pop %v694
        %v696 = vmul.f32 %v691, %v695
        %v697 = vpack.c.bf16 %v696, %v696
        %v699 = vsel %vm666, %v697, 0
        %vm701 = vcmask 1043456
        %v703 = vsel %vm701, %v665, 0
        %705 = vmatpush.bf16.msra.mxu0 0
        %706 = vmatpush.bf16.msra.mxu0 0
        %707 = vmatpush.bf16.msra.mxu0 0
        %708 = vmatpush.bf16.msra.mxu0 0
        %709 = vmatpush.bf16.msra.mxu0 0
        %710 = vmatpush.bf16.msra.mxu0 0
        %711 = vmatpush.bf16.msra.mxu0 0
        %712 = vmatpush.bf16.msra.mxu0 %v703
        %713 = vmatmul.bf16.gmra.mxu0 %v699
        %v714 = vpop.f32.mrf.mxu0
        %v715 = vadd.f32 0.0, %v714
        %v716 = vpop.f32.mrf.mxu0
        %717 = vdwg.mxu0
        %v718 = vpack.c.bf16 %v715, %v715
        %v720 = vunpack.c.l.b16 %v599
        %v721 = vpack.c.b16 %v720, %v720
        %722 = vrot.lane.b32.xlu0 %v721, 120
        %v723 = vpop.permute.xlu0 %722
        %v725 = vunpack.c.l.b16 %v632
        %v726 = vpack.c.b16 %v725, %v725
        %727 = vrot.lane.b32.xlu0 %v726, 120
        %v728 = vpop.permute.xlu0 %727
        %v730 = vsel %vm666, %v723, 0
        %v733 = vsel %vm666, %v728, 0
        %735 = vmatpush.bf16.xpose.msra.mxu0 0
        %736 = vmatpush.bf16.xpose.msra.mxu0 0
        %737 = vmatpush.bf16.xpose.msra.mxu0 0
        %738 = vmatpush.bf16.xpose.msra.mxu0 0
        %739 = vmatpush.bf16.xpose.msra.mxu0 0
        %740 = vmatpush.bf16.xpose.msra.mxu0 0
        %741 = vmatpush.bf16.xpose.msra.mxu0 0
        %742 = vmatpush.bf16.xpose.msra.mxu0 %v733
        %743 = vmatmul.bf16.gmra.mxu0 %v730
        %v744 = vpop.f32.mrf.mxu0
        %v745 = vadd.f32 0.0, %v744
        %v746 = vpop.f32.mrf.mxu0
        %747 = vdwg.mxu0
        %v748 = vsel %vm666, %v745, -inf
        %749 = vmax.xlane.f32.xlu0 %v748
        %v750 = vpop.xlane.xlu0 %749
        %v751 = vsub.f32 %v745, %v750
        %v752 = vmul.f32 %v751, 1.442695
        %v753 = vpow.pop %v752
        %v754 = vsel %vm666, %v753, 0.0
        %755 = vadd.xlane.f32.xlu0 %v754
        %v756 = vpop.xlane.xlu0 %755
        %v757 = vrcp.pop %v756
        %v758 = vmul.f32 %v753, %v757
        %v759 = vpack.c.bf16 %v758, %v758
        %v761 = vunpack.c.l.b16 %v665
        %v762 = vpack.c.b16 %v761, %v761
        %763 = vrot.lane.b32.xlu0 %v762, 120
        %v764 = vpop.permute.xlu0 %763
        %v766 = vsel %vm666, %v759, 0
        %v769 = vsel %vm701, %v764, 0
        %771 = vmatpush.bf16.msra.mxu0 0
        %772 = vmatpush.bf16.msra.mxu0 0
        %773 = vmatpush.bf16.msra.mxu0 0
        %774 = vmatpush.bf16.msra.mxu0 0
        %775 = vmatpush.bf16.msra.mxu0 0
        %776 = vmatpush.bf16.msra.mxu0 0
        %777 = vmatpush.bf16.msra.mxu0 0
        %778 = vmatpush.bf16.msra.mxu0 %v769
        %779 = vmatmul.bf16.gmra.mxu0 %v766
        %v780 = vpop.f32.mrf.mxu0
        %v781 = vadd.f32 0.0, %v780
        %v782 = vpop.f32.mrf.mxu0
        %783 = vdwg.mxu0
        %v784 = vpack.c.bf16 %v781, %v781
        %v786 = vsel %vm666, %v784, 0
        %v789 = vsel %vm701, %v559, 0
        %791 = vmatpush.bf16.msra.mxu0 0
        %792 = vmatpush.bf16.msra.mxu0 0
        %793 = vmatpush.bf16.msra.mxu0 0
        %794 = vmatpush.bf16.msra.mxu0 0
        %795 = vmatpush.bf16.msra.mxu0 0
        %796 = vmatpush.bf16.msra.mxu0 0
        %797 = vmatpush.bf16.msra.mxu0 0
        %798 = vmatpush.bf16.msra.mxu0 %v789
        %799 = vmatmul.bf16.gmra.mxu0 %v786
        %v800 = vpop.f32.mrf.mxu0
        %v801 = vadd.f32 0.0, %v800
        %v802 = vpop.f32.mrf.mxu0
        %803 = vdwg.mxu0
        %v805 = vsel %vm666, %v718, 0
        %v808 = vsel %vm701, %v558, 0
        %810 = vmatpush.bf16.msra.mxu0 0
        %811 = vmatpush.bf16.msra.mxu0 0
        %812 = vmatpush.bf16.msra.mxu0 0
        %813 = vmatpush.bf16.msra.mxu0 0
        %814 = vmatpush.bf16.msra.mxu0 0
        %815 = vmatpush.bf16.msra.mxu0 0
        %816 = vmatpush.bf16.msra.mxu0 0
        %817 = vmatpush.bf16.msra.mxu0 %v808
        %818 = vmatmul.bf16.gmra.mxu0 %v805
        %v819 = vpop.f32.mrf.mxu0
        %v820 = vadd.f32 %v801, %v819
        %v821 = vpop.f32.mrf.mxu0
        %822 = vdwg.mxu0
        %823 = vrot.lane.b32.xlu0 %v721, 112
        %v824 = vpop.permute.xlu0 %823
        %825 = vrot.lane.b32.xlu0 %v726, 112
        %v826 = vpop.permute.xlu0 %825
        %v828 = vsel %vm666, %v824, 0
        %v831 = vsel %vm666, %v826, 0
        %833 = vmatpush.bf16.xpose.msra.mxu0 0
        %834 = vmatpush.bf16.xpose.msra.mxu0 0
        %835 = vmatpush.bf16.xpose.msra.mxu0 0
        %836 = vmatpush.bf16.xpose.msra.mxu0 0
        %837 = vmatpush.bf16.xpose.msra.mxu0 0
        %838 = vmatpush.bf16.xpose.msra.mxu0 0
        %839 = vmatpush.bf16.xpose.msra.mxu0 0
        %840 = vmatpush.bf16.xpose.msra.mxu0 %v831
        %841 = vmatmul.bf16.gmra.mxu0 %v828
        %v842 = vpop.f32.mrf.mxu0
        %v843 = vadd.f32 0.0, %v842
        %v844 = vpop.f32.mrf.mxu0
        %845 = vdwg.mxu0
        %v846 = vsel %vm666, %v843, -inf
        %847 = vmax.xlane.f32.xlu0 %v846
        %v848 = vpop.xlane.xlu0 %847
        %v849 = vsub.f32 %v843, %v848
        %v850 = vmul.f32 %v849, 1.442695
        %v851 = vpow.pop %v850
        %v852 = vsel %vm666, %v851, 0.0
        %853 = vadd.xlane.f32.xlu0 %v852
        %v854 = vpop.xlane.xlu0 %853
        %v855 = vrcp.pop %v854
        %v856 = vmul.f32 %v851, %v855
        %v857 = vpack.c.bf16 %v856, %v856
        %858 = vrot.lane.b32.xlu0 %v762, 112
        %v859 = vpop.permute.xlu0 %858
        %v861 = vsel %vm666, %v857, 0
        %v864 = vsel %vm701, %v859, 0
        %866 = vmatpush.bf16.msra.mxu0 0
        %867 = vmatpush.bf16.msra.mxu0 0
        %868 = vmatpush.bf16.msra.mxu0 0
        %869 = vmatpush.bf16.msra.mxu0 0
        %870 = vmatpush.bf16.msra.mxu0 0
        %871 = vmatpush.bf16.msra.mxu0 0
        %872 = vmatpush.bf16.msra.mxu0 0
        %873 = vmatpush.bf16.msra.mxu0 %v864
        %874 = vmatmul.bf16.gmra.mxu0 %v861
        %v875 = vpop.f32.mrf.mxu0
        %v876 = vadd.f32 0.0, %v875
        %v877 = vpop.f32.mrf.mxu0
        %878 = vdwg.mxu0
        %v879 = vpack.c.bf16 %v876, %v876
        %v881 = vsel %vm666, %v879, 0
        %v884 = vsel %vm701, %v560, 0
        %886 = vmatpush.bf16.msra.mxu0 0
        %887 = vmatpush.bf16.msra.mxu0 0
        %888 = vmatpush.bf16.msra.mxu0 0
        %889 = vmatpush.bf16.msra.mxu0 0
        %890 = vmatpush.bf16.msra.mxu0 0
        %891 = vmatpush.bf16.msra.mxu0 0
        %892 = vmatpush.bf16.msra.mxu0 0
        %893 = vmatpush.bf16.msra.mxu0 %v884
        %894 = vmatmul.bf16.gmra.mxu0 %v881
        %v895 = vpop.f32.mrf.mxu0
        %v896 = vadd.f32 0.0, %v895
        %v897 = vpop.f32.mrf.mxu0
        %898 = vdwg.mxu0
        %v899 = vadd.f32 %v820, %v896
        %900 = vrot.lane.b32.xlu0 %v721, 104
        %v901 = vpop.permute.xlu0 %900
        %902 = vrot.lane.b32.xlu0 %v726, 104
        %v903 = vpop.permute.xlu0 %902
        %v905 = vsel %vm666, %v901, 0
        %v908 = vsel %vm666, %v903, 0
        %910 = vmatpush.bf16.xpose.msra.mxu0 0
        %911 = vmatpush.bf16.xpose.msra.mxu0 0
        %912 = vmatpush.bf16.xpose.msra.mxu0 0
        %913 = vmatpush.bf16.xpose.msra.mxu0 0
        %914 = vmatpush.bf16.xpose.msra.mxu0 0
        %915 = vmatpush.bf16.xpose.msra.mxu0 0
        %916 = vmatpush.bf16.xpose.msra.mxu0 0
        %917 = vmatpush.bf16.xpose.msra.mxu0 %v908
        %918 = vmatmul.bf16.gmra.mxu0 %v905
        %v919 = vpop.f32.mrf.mxu0
        %v920 = vadd.f32 0.0, %v919
        %v921 = vpop.f32.mrf.mxu0
        %922 = vdwg.mxu0
        %v923 = vsel %vm666, %v920, -inf
        %924 = vmax.xlane.f32.xlu0 %v923
        %v925 = vpop.xlane.xlu0 %924
        %v926 = vsub.f32 %v920, %v925
        %v927 = vmul.f32 %v926, 1.442695
        %v928 = vpow.pop %v927
        %v929 = vsel %vm666, %v928, 0.0
        %930 = vadd.xlane.f32.xlu0 %v929
        %v931 = vpop.xlane.xlu0 %930
        %v932 = vrcp.pop %v931
        %v933 = vmul.f32 %v928, %v932
        %v934 = vpack.c.bf16 %v933, %v933
        %935 = vrot.lane.b32.xlu0 %v762, 104
        %v936 = vpop.permute.xlu0 %935
        %v938 = vsel %vm666, %v934, 0
        %v941 = vsel %vm701, %v936, 0
        %943 = vmatpush.bf16.msra.mxu0 0
        %944 = vmatpush.bf16.msra.mxu0 0
        %945 = vmatpush.bf16.msra.mxu0 0
        %946 = vmatpush.bf16.msra.mxu0 0
        %947 = vmatpush.bf16.msra.mxu0 0
        %948 = vmatpush.bf16.msra.mxu0 0
        %949 = vmatpush.bf16.msra.mxu0 0
        %950 = vmatpush.bf16.msra.mxu0 %v941
        %951 = vmatmul.bf16.gmra.mxu0 %v938
        %v952 = vpop.f32.mrf.mxu0
        %v953 = vadd.f32 0.0, %v952
        %v954 = vpop.f32.mrf.mxu0
        %955 = vdwg.mxu0
        %v956 = vpack.c.bf16 %v953, %v953
        %v958 = vsel %vm666, %v956, 0
        %v961 = vsel %vm701, %v561, 0
        %963 = vmatpush.bf16.msra.mxu0 0
        %964 = vmatpush.bf16.msra.mxu0 0
        %965 = vmatpush.bf16.msra.mxu0 0
        %966 = vmatpush.bf16.msra.mxu0 0
        %967 = vmatpush.bf16.msra.mxu0 0
        %968 = vmatpush.bf16.msra.mxu0 0
        %969 = vmatpush.bf16.msra.mxu0 0
        %970 = vmatpush.bf16.msra.mxu0 %v961
        %971 = vmatmul.bf16.gmra.mxu0 %v958
        %v972 = vpop.f32.mrf.mxu0
        %v973 = vadd.f32 0.0, %v972
        %v974 = vpop.f32.mrf.mxu0
        %975 = vdwg.mxu0
        %v976 = vadd.f32 %v899, %v973
        %v978 = vperm.slane %v565, 0
        %v980 = vadd.f32 %v976, %v978
        %981 = vst.msk [vmem:[%s544] sm:$0xff] %vm582, %v980
        %s982 = sand.u32 %s287, 1
        %s983 = scalar_lea.sflag [#allocation4], %s982
        %s984 = sand.u32 %s287, 1
        %s985 = smul.addr %s984, 8
        %s986 = scalar_lea.vmem [#allocation14], %s985
        // Predicated region
        $region93: #{tpu_custom_call.1} parent=63 // pred_check
          %p987 = pneg %p297
        $region94: #{tpu_custom_call.1} parent=63 // pred_check_branch
          %989 = sbr.rel (%p987) target = $region96
        $region95: #{tpu_custom_call.1} parent=63 // pred_region
          %991 = vsyncadd %s983, 0
          %s992 = smul.addr %s33, 8
          %s993 = scalar_lea.hbm %s11, %s992
          %s995 = sshll.u32 %s986, 4
          %s996 = int_to_ptr.vmem [resolvable:$true] %s995
          %s997 = sshll.u32 %s993, 4
          %s998 = int_to_ptr.hbm [resolvable:$true] %s997
          %1000 = dma.vmem_to_hbm [thread:$0]  %s996, 128, %s998, %s983
        $region96: #{tpu_custom_call.1} parent=63 // pred_fallthru
          _
      $region64: #{tpu_custom_call.1} parent=5 // pred_fallthru
        _
      %p1001 = scmp.le.s32.totalorder 2, %s28
      // Predicated region
      $region97: #{tpu_custom_call.1} parent=5 // pred_check
        %p1002 = pneg %p1001
      $region98: #{tpu_custom_call.1} parent=5 // pred_check_branch
        %1004 = sbr.rel (%p1002) target = $region100
      $region99: #{tpu_custom_call.1} parent=5 // pred_region
        %s1005 = ssub.s32 %s28, 2
        // Predicated region
        $region101: #{tpu_custom_call.1} parent=99 // pred_check
          %p1006 = pneg %p303
        $region102: #{tpu_custom_call.1} parent=99 // pred_check_branch
          %1008 = sbr.rel (%p1006) target = $region104
        $region103: #{tpu_custom_call.1} parent=99 // pred_region
          %s1009 = sand.u32 %s288, 1
          %s1010 = scalar_lea.sflag [#allocation4], %s1009
          %s1011 = sand.u32 %s288, 1
          %s1012 = smul.addr %s1011, 8
          %s1013 = scalar_lea.vmem [#allocation14], %s1012
          %1015 = dma.done %s1010, 128
        $region104: #{tpu_custom_call.1} parent=99 // pred_fallthru
          _
      $region100: #{tpu_custom_call.1} parent=5 // pred_fallthru
        _
    $region6: #{tpu_custom_call.1} parent=1 // loop_footer
      %s32 = sadd.s32 1, %s28
    $region7: #{tpu_custom_call.1} parent=1 // loop_footer_branch
      %27 = sbr.rel target = $region3
    $region8: #{tpu_custom_call.1} parent=1 // loop_exit
      _
    %1016 = vsyncpa [#allocation3], 1
    %s1017 = scalar_lea.sflag [#allocation3], 1
    %1018 = vsyncpa %s1017, 1
    %1019 = vsyncpa [#allocation6], 1
    %s1020 = scalar_lea.sflag [#allocation6], 1
    %1021 = vsyncpa %s1020, 1
    %1022 = vsyncpa [#allocation9], 1
    %1023 = vsyncpa [#allocation12], 1
    %1024 = vsyncpa [#allocation4], 1
    %s1025 = scalar_lea.sflag [#allocation4], 1
    %1026 = vsyncpa %s1025, 1

</llo_original>
